<compile_context>
chip_gen: v5e
topology: v5e:2x2
jax: 0.10.0
libtpu: 0.0.40
codegen_flags: <defaults>
</compile_context>

<pallas_src>
import jax
import jax.numpy as jnp
from jax.experimental import pallas as pl
from jax.experimental.pallas import tpu as pltpu


def _round_up(n: int, m: int) -> int:
    return ((n + m - 1) // m) * m


def mlp_kernel(x_ref, w1_ref, b1_ref, w2_ref, b2_ref, o_ref):
    # ---- Linear1 + ReLU:  (H, K) @ (K, TB) -> (H, TB), f32 accumulation ----
    h = jnp.dot(w1_ref[...], x_ref[...], preferred_element_type=jnp.float32)
    h = jnp.maximum(h + b1_ref[...], 0.0)              # (H,TB) + (H,1) lane bcast

    # ---- Linear2 + ReLU:  (N, H) @ (H, TB) -> (N, TB) ----
    y = jnp.dot(w2_ref[...], h.astype(w2_ref.dtype),
                preferred_element_type=jnp.float32)
    y = jnp.maximum(y + b2_ref[...], 0.0)               # (2, TB)

    # ---- 2-class softmax == sigmoid of the logit difference (exact) ----
    d = y[1:2, :] - y[0:1, :]                           # (1, TB), lane-dense
    p1 = 1.0 / (1.0 + jnp.exp(-d))
    o_ref[0:1, :] = (1.0 - p1).astype(o_ref.dtype)
    o_ref[1:2, :] = p1.astype(o_ref.dtype)


def mlp_forward(x, w1, b1, w2, b2, *, block_b=4096, compute_dtype=jnp.float32):
    """x: (B, 13); w1: (32, 13); b1: (32, 1); w2: (2, 32); b2: (2, 1)."""
    B, K = x.shape
    H, K2 = w1.shape
    N = w2.shape[0]
    assert K == K2 and w2.shape[1] == H

    lane = 128
    b_ceil = _round_up(B, lane)                     # batch lives on the lane axis
    tb = min(_round_up(block_b, lane), b_ceil)
    # v7x megacore: make sure the "parallel" grid axis has >= 2 steps when the
    # batch is big enough, so both TensorCores get work (no-op on v5e/v6e).
    if b_ceil >= 2 * lane and b_ceil <= tb:
        tb = _round_up(pl.cdiv(b_ceil, 2), lane)
    b_pad = _round_up(b_ceil, tb)
    grid = (b_pad // tb,)

    # Hoisted casts: operands arrive in compute_dtype; biases stay f32.
    xd = x.astype(compute_dtype)
    if b_pad != B:
        # Padded columns are harmless (sliced off after the kernel).
        xd = jnp.pad(xd, ((0, b_pad - B), (0, 0)))
    x_t = xd.T                                       # (K, b_pad): lane-dense batch
    w1c = w1.astype(compute_dtype)
    w2c = w2.astype(compute_dtype)
    b1f = b1.astype(jnp.float32)
    b2f = b2.astype(jnp.float32)

    itemsize = jnp.dtype(compute_dtype).itemsize
    cost = pl.CostEstimate(
        flops=2 * b_pad * (K * H + H * N),
        transcendentals=b_pad,                        # one exp per column
        bytes_accessed=b_pad * K * itemsize + b_pad * N * 4
        + (K * H + H * N) * itemsize + (H + N) * 4,
    )

    out_t = pl.pallas_call(
        mlp_kernel,
        out_shape=jax.ShapeDtypeStruct((N, b_pad), jnp.float32),
        grid=grid,
        in_specs=[
            pl.BlockSpec((K, tb), lambda i: (0, i)),  # x^T tile (13, TB)
            pl.BlockSpec((H, K), lambda i: (0, 0)),   # W1 (32, 13), grid-resident
            pl.BlockSpec((H, 1), lambda i: (0, 0)),   # b1 (32, 1)
            pl.BlockSpec((N, H), lambda i: (0, 0)),   # W2 (2, 32)
            pl.BlockSpec((N, 1), lambda i: (0, 0)),   # b2 (2, 1)
        ],
        out_specs=pl.BlockSpec((N, tb), lambda i: (0, i)),  # lane-dense (2, TB)
        compiler_params=pltpu.CompilerParams(
            dimension_semantics=("parallel",),        # batch tiles across TCs
        ),
        cost_estimate=cost,
    )(x_t, w1c, b1f, w2c, b2f)

    return out_t[:, :B].T                             # (B, 2) f32


def init_params(key):
    # Deterministic init mimicking nn.Linear's U(-1/sqrt(fan_in), 1/sqrt(fan_in)),
    # stored in PyTorch layout: weight (out_features, in_features), bias (out, 1).
    k1, k2, k3, k4 = jax.random.split(key, 4)
    bound1 = 1.0 / jnp.sqrt(13.0)
    bound2 = 1.0 / jnp.sqrt(32.0)
    w1 = jax.random.uniform(k1, (32, 13), jnp.float32, -bound1, bound1)
    b1 = jax.random.uniform(k2, (32, 1), jnp.float32, -bound1, bound1)
    w2 = jax.random.uniform(k3, (2, 32), jnp.float32, -bound2, bound2)
    b2 = jax.random.uniform(k4, (2, 1), jnp.float32, -bound2, bound2)
    return w1, b1, w2, b2


def reference_forward(x, w1, b1, w2, b2, compute_dtype=jnp.float32):
    xd = x.astype(compute_dtype)
    h = jnp.dot(xd, w1.T.astype(compute_dtype),
                preferred_element_type=jnp.float32) + b1.T
    h = jnp.maximum(h, 0.0)
    y = jnp.dot(h.astype(compute_dtype), w2.T.astype(compute_dtype),
                preferred_element_type=jnp.float32) + b2.T
    y = jnp.maximum(y, 0.0)
    return jax.nn.softmax(y, axis=-1)


if __name__ == "__main__":
    key = jax.random.PRNGKey(0)
    kx, kp = jax.random.split(key)
    w1, b1, w2, b2 = init_params(kp)

    # --- Small-batch run, f32 compute ---
    B = 8
    x = jax.random.normal(kx, (B, 13), jnp.float32)
    out = mlp_forward(x, w1, b1, w2, b2, compute_dtype=jnp.float32)
    out = jax.block_until_ready(out)
    ref = reference_forward(x, w1, b1, w2, b2, jnp.float32)
    assert out.shape == (B, 2)
    assert jnp.allclose(out, ref, atol=1e-2, rtol=1e-2), "f32 mismatch vs reference"
    assert jnp.allclose(jnp.sum(out, axis=-1), 1.0, atol=1e-4), \
        "softmax rows must sum to 1"

    # --- Multi-tile run: padding, grid > 1, bf16 MXU operands ---
    B2 = 300  # not a multiple of the tile -> exercises padding and a 2-step grid
    x2 = jax.random.normal(jax.random.PRNGKey(1), (B2, 13), jnp.float32)
    out2 = mlp_forward(x2, w1, b1, w2, b2, block_b=512, compute_dtype=jnp.bfloat16)
    out2 = jax.block_until_ready(out2)
    ref2 = reference_forward(x2, w1, b1, w2, b2, jnp.bfloat16)
    assert out2.shape == (B2, 2)
    assert jnp.allclose(out2, ref2, atol=2e-2, rtol=2e-2), "bf16 mismatch vs reference"
    assert jnp.allclose(jnp.sum(out2, axis=-1), 1.0, atol=1e-4), \
        "softmax rows must sum to 1"

    print("KERNEL_OK")
</pallas_src>

<mosaic_0001>
module attributes {stable_mosaic.version = 11 : i64} {
  func.func @mlp_kernel(%arg0: i32, %arg1: memref<13x128xf32, #tpu.memory_space<vmem>>, %arg2: memref<32x13xf32, #tpu.memory_space<vmem>>, %arg3: memref<32x1xf32, #tpu.memory_space<vmem>>, %arg4: memref<2x32xf32, #tpu.memory_space<vmem>>, %arg5: memref<2x1xf32, #tpu.memory_space<vmem>>, %arg6: memref<2x128xf32, #tpu.memory_space<vmem>>) attributes {dimension_semantics = [#tpu.dimension_semantics<parallel>], iteration_bounds = array<i64: 1>, scalar_prefetch = 0 : i64, scratch_operands = 0 : i64, tpu.core_type = #tpu.core_type<tc>, window_params = [{transform_indices = @transform_0, window_bounds = array<i64: 13, 128>}, {pipeline_mode = #tpu.pipeline_mode<synchronous>, transform_indices = @transform_1, window_bounds = array<i64: 32, 13>}, {pipeline_mode = #tpu.pipeline_mode<synchronous>, transform_indices = @transform_2, window_bounds = array<i64: 32, 1>}, {pipeline_mode = #tpu.pipeline_mode<synchronous>, transform_indices = @transform_3, window_bounds = array<i64: 2, 32>}, {pipeline_mode = #tpu.pipeline_mode<synchronous>, transform_indices = @transform_4, window_bounds = array<i64: 2, 1>}, {transform_indices = @transform_5, window_bounds = array<i64: 2, 128>}]} {
    %c0 = arith.constant 0 : index
    %c0_0 = arith.constant 0 : index
    %0 = vector.load %arg2[%c0, %c0_0] : memref<32x13xf32, #tpu.memory_space<vmem>>, vector<32x13xf32>
    %c0_1 = arith.constant 0 : index
    %c0_2 = arith.constant 0 : index
    %1 = vector.load %arg1[%c0_1, %c0_2] : memref<13x128xf32, #tpu.memory_space<vmem>>, vector<13x128xf32>
    %cst = arith.constant dense<0.000000e+00> : vector<32x128xf32>
    %2 = tpu.matmul %0, %1, %cst {dimension_numbers = #tpu.dot_dimension_numbers<[1], [0], [0], [1], [0, 0, 1, 1], [], []>} : vector<32x13xf32>, vector<13x128xf32>, vector<32x128xf32> -> vector<32x128xf32>
    %c0_3 = arith.constant 0 : index
    %c0_4 = arith.constant 0 : index
    %3 = vector.load %arg3[%c0_3, %c0_4] : memref<32x1xf32, #tpu.memory_space<vmem>>, vector<32x1xf32>
    %4 = vector.broadcast %3 : vector<32x1xf32> to vector<32x128xf32>
    %5 = arith.addf %2, %4 : vector<32x128xf32>
    %cst_5 = arith.constant 0.000000e+00 : f32
    %6 = vector.broadcast %cst_5 : f32 to vector<32x128xf32>
    %7 = arith.maximumf %5, %6 : vector<32x128xf32>
    %c0_6 = arith.constant 0 : index
    %c0_7 = arith.constant 0 : index
    %8 = vector.load %arg4[%c0_6, %c0_7] : memref<2x32xf32, #tpu.memory_space<vmem>>, vector<2x32xf32>
    %cst_8 = arith.constant dense<0.000000e+00> : vector<2x128xf32>
    %9 = tpu.matmul %8, %7, %cst_8 {dimension_numbers = #tpu.dot_dimension_numbers<[1], [0], [0], [1], [0, 0, 1, 1], [], []>} : vector<2x32xf32>, vector<32x128xf32>, vector<2x128xf32> -> vector<2x128xf32>
    %c0_9 = arith.constant 0 : index
    %c0_10 = arith.constant 0 : index
    %10 = vector.load %arg5[%c0_9, %c0_10] : memref<2x1xf32, #tpu.memory_space<vmem>>, vector<2x1xf32>
    %11 = vector.broadcast %10 : vector<2x1xf32> to vector<2x128xf32>
    %12 = arith.addf %9, %11 : vector<2x128xf32>
    %cst_11 = arith.constant 0.000000e+00 : f32
    %13 = vector.broadcast %cst_11 : f32 to vector<2x128xf32>
    %14 = arith.maximumf %12, %13 : vector<2x128xf32>
    %15 = vector.extract_strided_slice %14 {offsets = [1, 0], sizes = [1, 128], strides = [1, 1]} : vector<2x128xf32> to vector<1x128xf32>
    %16 = vector.extract_strided_slice %14 {offsets = [0, 0], sizes = [1, 128], strides = [1, 1]} : vector<2x128xf32> to vector<1x128xf32>
    %17 = arith.subf %15, %16 : vector<1x128xf32>
    %cst_12 = arith.constant 0.000000e+00 : f32
    %18 = vector.broadcast %cst_12 : f32 to vector<1x128xf32>
    %19 = arith.subf %18, %17 : vector<1x128xf32>
    %20 = math.exp %19 : vector<1x128xf32>
    %cst_13 = arith.constant 1.000000e+00 : f32
    %21 = vector.broadcast %cst_13 : f32 to vector<1x128xf32>
    %22 = arith.addf %21, %20 : vector<1x128xf32>
    %cst_14 = arith.constant 1.000000e+00 : f32
    %23 = vector.broadcast %cst_14 : f32 to vector<1x128xf32>
    %24 = arith.divf %23, %22 : vector<1x128xf32>
    %cst_15 = arith.constant 1.000000e+00 : f32
    %25 = vector.broadcast %cst_15 : f32 to vector<1x128xf32>
    %26 = arith.subf %25, %24 : vector<1x128xf32>
    %c0_16 = arith.constant 0 : index
    %c0_17 = arith.constant 0 : index
    %27 = vector.load %arg6[%c0_16, %c0_17] : memref<2x128xf32, #tpu.memory_space<vmem>>, vector<1x128xf32>
    tpu.vector_store %arg6[%c0_16, %c0_17], %26 {strides = array<i32>} : memref<2x128xf32, #tpu.memory_space<vmem>>, vector<1x128xf32>,
    %c1 = arith.constant 1 : index
    %c0_18 = arith.constant 0 : index
    %28 = vector.load %arg6[%c1, %c0_18] : memref<2x128xf32, #tpu.memory_space<vmem>>, vector<1x128xf32>
    tpu.vector_store %arg6[%c1, %c0_18], %24 {strides = array<i32>} : memref<2x128xf32, #tpu.memory_space<vmem>>, vector<1x128xf32>,
    return
  }
  func.func @transform_0(%arg0: i32) -> (i32, i32) {
    %c0_i32 = arith.constant 0 : i32
    %c0_i32_0 = arith.constant 0 : i32
    return %c0_i32, %arg0 : i32, i32
  }
  func.func @transform_1(%arg0: i32) -> (i32, i32) {
    %c0_i32 = arith.constant 0 : i32
    %c0_i32_0 = arith.constant 0 : i32
    %c0_i32_1 = arith.constant 0 : i32
    return %c0_i32, %c0_i32_0 : i32, i32
  }
  func.func @transform_2(%arg0: i32) -> (i32, i32) {
    %c0_i32 = arith.constant 0 : i32
    %c0_i32_0 = arith.constant 0 : i32
    %c0_i32_1 = arith.constant 0 : i32
    return %c0_i32, %c0_i32_0 : i32, i32
  }
  func.func @transform_3(%arg0: i32) -> (i32, i32) {
    %c0_i32 = arith.constant 0 : i32
    %c0_i32_0 = arith.constant 0 : i32
    %c0_i32_1 = arith.constant 0 : i32
    return %c0_i32, %c0_i32_0 : i32, i32
  }
  func.func @transform_4(%arg0: i32) -> (i32, i32) {
    %c0_i32 = arith.constant 0 : i32
    %c0_i32_0 = arith.constant 0 : i32
    %c0_i32_1 = arith.constant 0 : i32
    return %c0_i32, %c0_i32_0 : i32, i32
  }
  func.func @transform_5(%arg0: i32) -> (i32, i32) {
    %c0_i32 = arith.constant 0 : i32
    %c0_i32_0 = arith.constant 0 : i32
    return %c0_i32, %arg0 : i32, i32
  }
}

</mosaic_0001>

<llo_original>
// kernel: tpu_custom_call.1
$region0: #{tpu_custom_call.1}
  #allocation0 [shape = 'u32[]', space=smem, size = 0x4, offset = 0x4, fixed_abs, tag = 'smem constant byte address 0x4 - core index']
  #allocation1 [shape = 'u32[72,128]{1,0:T(1,128)}', space=vmem, size = 0x9000, scoped, tag = 'internal scratch']
  %s0 = inlined_call_operand.vmem [shape: f32[13,128], index: 0, kind: input, shape index: {}]
  %s1 = inlined_call_operand.vmem [shape: f32[32,13], index: 1, kind: input, shape index: {}]
  %s2 = inlined_call_operand.vmem [shape: f32[32,1], index: 2, kind: input, shape index: {}]
  %s3 = inlined_call_operand.vmem [shape: f32[2,32], index: 3, kind: input, shape index: {}]
  %s4 = inlined_call_operand.vmem [shape: f32[2,1], index: 4, kind: input, shape index: {}]
  %s5 = inlined_call_operand.hbm [shape: f32[2,128], index: 5, kind: output, shape index: {}]
  %s6 = sld [smem:[#allocation0]]
  $region30: #{tpu_custom_call.1} parent=0
    _
  %s8 = ssub.s32 1, %s6
  %s9 = scalar_select 0, %s8, %s6
  $region1: #{tpu_custom_call.1} parent=0
    #allocation2 [shape = 'u8[1024]{0}', space=vmem, size = 0x400, scoped, tag = 'output window, operand 0, single buffered']
    #allocation3 [shape = 's32[1]{0}', space=sflag, size = 0x4, scoped, tag = 'scoped memory for tpu_custom_call.1']
    %10 = vsyncpa [#allocation3], 0
    // Predicated region
    $region2: #{tpu_custom_call.1} parent=1 // pred_check
      _
    $region3: #{tpu_custom_call.1} parent=1 // pred_check_branch
      %12 = sbr.rel (0) target = $region5
    $region4: #{tpu_custom_call.1} parent=1 // pred_region
      _
    $region5: #{tpu_custom_call.1} parent=1 // pred_fallthru
      _
    // Predicated region
    $region6: #{tpu_custom_call.1} parent=1 // pred_check
      _
    $region7: #{tpu_custom_call.1} parent=1 // pred_check_branch
      %14 = sbr.rel (0) target = $region9
    $region8: #{tpu_custom_call.1} parent=1 // pred_region
      _
    $region9: #{tpu_custom_call.1} parent=1 // pred_fallthru
      _
    // Predicated region
    $region10: #{tpu_custom_call.1} parent=1 // pred_check
      _
    $region11: #{tpu_custom_call.1} parent=1 // pred_check_branch
      %16 = sbr.rel (0) target = $region13
    $region12: #{tpu_custom_call.1} parent=1 // pred_region
      _
    $region13: #{tpu_custom_call.1} parent=1 // pred_fallthru
      _
    // Predicated region
    $region14: #{tpu_custom_call.1} parent=1 // pred_check
      _
    $region15: #{tpu_custom_call.1} parent=1 // pred_check_branch
      %18 = sbr.rel (0) target = $region17
    $region16: #{tpu_custom_call.1} parent=1 // pred_region
      _
    $region17: #{tpu_custom_call.1} parent=1 // pred_fallthru
      _
    // Predicated region
    $region18: #{tpu_custom_call.1} parent=1 // pred_check
      _
    $region19: #{tpu_custom_call.1} parent=1 // pred_check_branch
      %20 = sbr.rel (0) target = $region21
    $region20: #{tpu_custom_call.1} parent=1 // pred_region
      _
    $region21: #{tpu_custom_call.1} parent=1 // pred_fallthru
      _
    %v21 = vld [vmem:[%s1] sm:$0xff]
    %v22 = vld [vmem:[%s1 + $0x8] sm:$0xff]
    %v23 = vld [vmem:[%s1 + $0x10] sm:$0xff]
    %v24 = vld [vmem:[%s1 + $0x18] sm:$0xff]
    %v25 = vld [vmem:[%s0] sm:$0xff]
    %v26 = vld [vmem:[%s0 + $0x8] sm:$0x1f]
    %v27 = vld [vmem:[%s2] sm:$0xff]
    %v28 = vld [vmem:[%s2 + $0x8] sm:$0xff]
    %v29 = vld [vmem:[%s2 + $0x10] sm:$0xff]
    %v30 = vld [vmem:[%s2 + $0x18] sm:$0xff]
    %32 = vset.pattern.permute.xlu0 0
    %33 = vperm.xlu0 %32, %v27
    %v34 = vpop.permute.xlu0 %33
    %37 = vset.pattern.permute.xlu0 0
    %38 = vperm.xlu0 %37, %v28
    %v39 = vpop.permute.xlu0 %38
    %42 = vset.pattern.permute.xlu0 0
    %43 = vperm.xlu0 %42, %v29
    %v44 = vpop.permute.xlu0 %43
    %47 = vset.pattern.permute.xlu0 0
    %48 = vperm.xlu0 %47, %v30
    %v49 = vpop.permute.xlu0 %48
    %vm51 = vcmask 105472
    %v53 = vsel %vm51, %v21, 0
    %v56 = vsel %vm51, %v22, 0
    %v59 = vsel %vm51, %v23, 0
    %v62 = vsel %vm51, %v24, 0
    %vm64 = vcmask 1044480
    %v66 = vsel %vm64, %v26, 0
    %68 = vmatpush.msra.mxu0 0.0
    %69 = vmatpush.msra.mxu0 0.0
    %70 = vmatpush.msra.mxu0 0.0
    %71 = vmatpush.msra.mxu0 0.0
    %72 = vmatpush.msra.mxu0 0.0
    %73 = vmatpush.msra.mxu0 0.0
    %74 = vmatpush.msra.mxu0 0.0
    %75 = vmatpush.msra.mxu0 0.0
    %76 = vmatpush.msra.mxu0 0.0
    %77 = vmatpush.msra.mxu0 0.0
    %78 = vmatpush.msra.mxu0 0.0
    %79 = vmatpush.msra.mxu0 0.0
    %80 = vmatpush.msra.mxu0 0.0
    %81 = vmatpush.msra.mxu0 0.0
    %82 = vmatpush.msra.mxu0 %v66
    %83 = vmatpush.msra.mxu0 %v25
    %84 = vmatmul.f32.gmra.mxu0 %v53
    %v85 = vpop.f32.mrf.mxu0
    %v86 = vadd.f32 %v34, %v85
    %87 = vmatmul.f32.gmra.mxu0 %v56
    %v88 = vpop.f32.mrf.mxu0
    %v89 = vadd.f32 %v39, %v88
    %90 = vmatmul.f32.gmra.mxu0 %v59
    %v91 = vpop.f32.mrf.mxu0
    %v92 = vadd.f32 %v44, %v91
    %93 = vmatmul.f32.gmra.mxu0 %v62
    %v94 = vpop.f32.mrf.mxu0
    %v95 = vadd.f32 %v49, %v94
    %96 = vdwg.mxu0
    %v97 = vmax.f32 %v86, 0.0
    %v98 = vmax.f32 %v89, 0.0
    %v99 = vmax.f32 %v92, 0.0
    %v100 = vmax.f32 %v95, 0.0
    %v101 = vld [vmem:[%s3] sm:$0x3]
    %v102 = vld [vmem:[%s4] sm:$0x3]
    %104 = vset.pattern.permute.xlu0 0
    %105 = vperm.xlu0 %104, %v102
    %v106 = vpop.permute.xlu0 %105
    %vm108 = vcmask 261120
    %v110 = vsel %vm108, %v101, 0
    %112 = vmatpush.msra.mxu0 0.0
    %113 = vmatpush.msra.mxu0 0.0
    %114 = vmatpush.msra.mxu0 0.0
    %115 = vmatpush.msra.mxu0 0.0
    %116 = vmatpush.msra.mxu0 0.0
    %117 = vmatpush.msra.mxu0 0.0
    %118 = vmatpush.msra.mxu0 0.0
    %119 = vmatpush.msra.mxu0 0.0
    %120 = vmatpush.msra.mxu0 0.0
    %121 = vmatpush.msra.mxu0 0.0
    %122 = vmatpush.msra.mxu0 0.0
    %123 = vmatpush.msra.mxu0 0.0
    %124 = vmatpush.msra.mxu0 %v100
    %125 = vmatpush.msra.mxu0 %v99
    %126 = vmatpush.msra.mxu0 %v98
    %127 = vmatpush.msra.mxu0 %v97
    %128 = vmatmul.f32.gmra.mxu0 %v110
    %v129 = vpop.f32.mrf.mxu0
    %v130 = vadd.f32 %v106, %v129
    %131 = vdwg.mxu0
    %v132 = vmax.f32 %v130, 0.0
    %v134 = vrot.slane %v132, 7
    %v136 = vsub.f32 %v132, %v134
    %v137 = vsub.f32 0.0, %v136
    %v138 = vmul.f32 %v137, 1.442695
    %v139 = vpow.pop %v138
    %v140 = vadd.f32 %v139, 1.0
    %v141 = vrcp.pop %v140
    %v142 = vmul.f32 %v140, %v141
    %v143 = vsub.f32 1.0, %v142
    %v144 = vmul.f32 %v141, %v143
    %v145 = vadd.f32 %v141, %v144
    %vm146 = vweird.f32 %v140
    %vm147 = vweird.f32 %v141
    %vm148 = vmor %vm146, %vm147
    %v149 = vsel %vm148, %v141, %v145
    %v150 = vand.u32 2147483647, %v140
    %vm151 = vcmp.eq.f32.partialorder %v150, 8.507059e+37
    %v152 = vand.u32 %v140, 2147483648
    %v153 = vor.u32 1.1754944e-38, %v152
    %v154 = vsel %vm151, %v153, %v149
    %v155 = vmul.f32 1.0, %v154
    %v156 = vsub.f32 1.0, %v155
    %157 = vst [vmem:[#allocation2 - $0x1] sm:$0x2] %v156
    %158 = vst [vmem:[#allocation2] sm:$0x2] %v155
    // Predicated region
    $region22: #{tpu_custom_call.1} parent=1 // pred_check
      _
    $region23: #{tpu_custom_call.1} parent=1 // pred_check_branch
      %160 = sbr.rel (0) target = $region25
    $region24: #{tpu_custom_call.1} parent=1 // pred_region
      %162 = vsyncadd [#allocation3], 0
      %s164 = sshll.u32 [#allocation2], 4
      %s165 = int_to_ptr.vmem [resolvable:$true] %s164
      %s166 = sshll.u32 %s5, 4
      %s167 = int_to_ptr.hbm [resolvable:$true] %s166
      %169 = dma.vmem_to_hbm [thread:$0]  %s165, 32, %s167, [#allocation3]
    $region25: #{tpu_custom_call.1} parent=1 // pred_fallthru
      _
    // Predicated region
    $region26: #{tpu_custom_call.1} parent=1 // pred_check
      _
    $region27: #{tpu_custom_call.1} parent=1 // pred_check_branch
      %171 = sbr.rel (0) target = $region29
    $region28: #{tpu_custom_call.1} parent=1 // pred_region
      %173 = dma.done [#allocation3], 32
    $region29: #{tpu_custom_call.1} parent=1 // pred_fallthru
      _
    %174 = vsyncpa [#allocation3], 1

</llo_original>
